<compile_context>
chip_gen: v5e
topology: v5e:2x2
jax: 0.10.0
libtpu: 0.0.40
codegen_flags: <defaults>
</compile_context>

<pallas_src>
import functools

import jax
import jax.numpy as jnp
from jax.experimental import pallas as pl
from jax.experimental.pallas import tpu as pltpu


def _nce_softmax_kernel(x_ref, label_ref, out_ref, *, topk, n_total, tile_n):
    i = pl.program_id(0)
    x = x_ref[...]                               # (tile_n, C), native dtype
    labels = label_ref[...]                      # (tile_n, 1) int32
    tn, c = x.shape

    # Global-row validity mask (handles the padded remainder tile).
    row = jax.lax.broadcasted_iota(jnp.int32, (tn, 1), 0)
    valid = (i * tile_n + row) < n_total         # (tile_n, 1) bool

    # One-hot via a (1, C) iota broadcast against (tile_n, 1) labels: no
    # full-tile iota materialization.
    col = jax.lax.broadcasted_iota(jnp.int32, (1, c), 1)
    onehot = col == labels                       # (tile_n, C) bool

    # --- native-dtype pass: row max, label-logit gather, rank compare --------
    m = jnp.max(x, axis=-1, keepdims=True)                              # (tile_n, 1)
    label_logit = jnp.sum(jnp.where(onehot, x, 0), axis=-1,
                          keepdims=True)                                # (tile_n, 1)
    gt = x > label_logit                                                # (tile_n, C) bool
    rank = jnp.sum(gt.astype(jnp.int32), axis=-1, keepdims=True)       # (tile_n, 1) int32

    # --- f32 pass: numerically stable logsumexp ------------------------------
    m_f32 = m.astype(jnp.float32)
    label_logit_f32 = label_logit.astype(jnp.float32)
    sum_exp = jnp.sum(jnp.exp(x.astype(jnp.float32) - m_f32), axis=-1,
                      keepdims=True)                                    # (tile_n, 1)

    per_row = (m_f32 - label_logit_f32) + jnp.log(sum_exp)              # (tile_n, 1)
    loss_sum = jnp.sum(jnp.where(valid, per_row, 0.0))                  # scalar

    # Per-k correct counts: label is in top-k iff fewer than k logits strictly
    # exceed it.
    counts = [jnp.sum(jnp.where(valid & (rank < k), 1.0, 0.0)) for k in topk]

    # Pack scalars into a lane-dense (1, 8, 128) partial block: sublane 0,
    # lane 0 = loss sum, lanes 1..K = per-k counts, rest zero.
    lane = jax.lax.broadcasted_iota(jnp.int32, (1, 8, 128), 2)
    sub = jax.lax.broadcasted_iota(jnp.int32, (1, 8, 128), 1)
    row0 = sub == 0
    vals = jnp.where(row0 & (lane == 0), loss_sum, 0.0)
    for j, cnt in enumerate(counts):
        vals = jnp.where(row0 & (lane == (1 + j)), cnt, vals)
    out_ref[...] = vals


def _choose_tile_n(n, c, itemsize):
    """Pick a batch tile: ~8 MiB target, double-buffered bytes <= ~24 MiB,
    rows a multiple of 16 (bf16 sublane packing), and never a single tile for
    N >= 32 (keeps both v7x TensorCores busy)."""
    row_bytes = max(1, c * itemsize)
    target_bytes = 8 * 1024 * 1024
    max_buffered_bytes = 24 * 1024 * 1024          # 2 x tile bytes <= this

    rows = min(target_bytes // row_bytes, max_buffered_bytes // (2 * row_bytes))
    rows = (rows // 16) * 16
    if rows < 16:
        rows = 8                                   # best effort for huge C

    if rows >= n:
        # Everything would fit in one tile.  Split into >= 2 parallel tiles
        # when there is enough work, so a 2-TC chip (v7x) shards it.
        if n >= 32:
            half = -(-n // 2)                      # cdiv(n, 2)
            half = -(-half // 16) * 16             # round up to multiple of 16
            if half < n:
                return half
        return n                                   # tiny N: single full tile
    return rows


def nce_softmax_loss(x, label, topk=(1, 5)):
    """Returns (loss, [acc_top1, acc_top5, ...]) matching NCESoftmaxLoss.forward."""
    x = jnp.squeeze(x)                             # mirrors torch x.squeeze()
    assert x.ndim == 2, "expected (N, C) logits after squeeze"
    n, c = x.shape
    num_k = len(topk)
    label2d = label.astype(jnp.int32).reshape(n, 1)

    tile_n = _choose_tile_n(n, c, jnp.dtype(x.dtype).itemsize)
    num_tiles = pl.cdiv(n, tile_n)

    kernel = functools.partial(
        _nce_softmax_kernel, topk=tuple(topk), n_total=n, tile_n=tile_n)

    partials = pl.pallas_call(
        kernel,
        out_shape=jax.ShapeDtypeStruct((num_tiles, 8, 128), jnp.float32),
        grid=(num_tiles,),
        in_specs=[
            pl.BlockSpec((tile_n, c), lambda i: (i, 0)),
            pl.BlockSpec((tile_n, 1), lambda i: (i, 0)),
        ],
        out_specs=pl.BlockSpec((1, 8, 128), lambda i: (i, 0, 0)),
        compiler_params=pltpu.CompilerParams(
            dimension_semantics=("parallel",),
            vmem_limit_bytes=32 * 1024 * 1024,     # safe on v5e / v6e / v7x
        ),
    )(x, label2d)          # x kept in its native dtype (bf16 halves HBM reads)

    row0 = partials[:, 0, :]                               # (num_tiles, 128)
    loss = jnp.sum(row0[:, 0]) * (1.0 / n)
    acc_list = [jnp.sum(row0[:, 1 + j]) * (100.0 / n) for j in range(num_k)]
    return loss, acc_list


def _reference(x, label, topk=(1, 5)):
    """Pure-JAX reference mirroring the PyTorch module (no ties assumed)."""
    x = jnp.squeeze(x).astype(jnp.float32)
    n = x.shape[0]
    lse = jax.scipy.special.logsumexp(x, axis=-1)
    lab_logit = jnp.take_along_axis(x, label[:, None], axis=-1)[:, 0]
    loss = jnp.mean(lse - lab_logit)
    rank = jnp.sum(x > lab_logit[:, None], axis=-1)
    accs = [jnp.sum(rank < k).astype(jnp.float32) * (100.0 / n) for k in topk]
    return loss, accs


if __name__ == "__main__":
    key = jax.random.PRNGKey(0)
    kx, kl = jax.random.split(key)

    N, C = 8, 128
    # x arrives with trailing singleton dims (as in the contrastive head); the
    # wrapper squeezes it exactly like the PyTorch module.
    x = jax.random.normal(kx, (N, C, 1, 1), dtype=jnp.float32)
    label = jax.random.randint(kl, (N,), 0, C, dtype=jnp.int32)

    loss, acc = nce_softmax_loss(x, label, topk=(1, 5))
    jax.block_until_ready(loss)
    for a in acc:
        jax.block_until_ready(a)

    ref_loss, ref_acc = _reference(x, label, topk=(1, 5))
    assert jnp.allclose(loss, ref_loss, rtol=1e-4, atol=1e-5), (loss, ref_loss)
    for a, ra in zip(acc, ref_acc):
        assert jnp.allclose(a, ra, rtol=1e-4, atol=1e-3), (a, ra)

    print("KERNEL_OK")
</pallas_src>

<mosaic_0001>
module attributes {stable_mosaic.version = 11 : i64} {
  func.func @_nce_softmax_kernel(%arg0: i32, %arg1: memref<8x128xf32, #tpu.memory_space<vmem>>, %arg2: memref<8x1xi32, #tpu.memory_space<vmem>>, %arg3: memref<1x8x128xf32, #tpu.memory_space<vmem>>) attributes {dimension_semantics = [#tpu.dimension_semantics<parallel>], iteration_bounds = array<i64: 1>, scalar_prefetch = 0 : i64, scratch_operands = 0 : i64, tpu.core_type = #tpu.core_type<tc>, window_params = [{transform_indices = @transform_0, window_bounds = array<i64: 8, 128>}, {transform_indices = @transform_1, window_bounds = array<i64: 8, 1>}, {transform_indices = @transform_2, window_bounds = array<i64: 1, 8, 128>}]} {
    %c0 = arith.constant 0 : index
    %c0_0 = arith.constant 0 : index
    %0 = vector.load %arg1[%c0, %c0_0] : memref<8x128xf32, #tpu.memory_space<vmem>>, vector<8x128xf32>
    %c0_1 = arith.constant 0 : index
    %c0_2 = arith.constant 0 : index
    %1 = vector.load %arg2[%c0_1, %c0_2] : memref<8x1xi32, #tpu.memory_space<vmem>>, vector<8x1xi32>
    %2 = tpu.iota {dimensions = array<i32: 0>} : vector<8x1xi32>
    %c8_i32 = arith.constant 8 : i32
    %3 = arith.muli %arg0, %c8_i32 : i32
    %4 = vector.broadcast %3 : i32 to vector<8x1xi32>
    %5 = arith.addi %4, %2 : vector<8x1xi32>
    %c8_i32_3 = arith.constant 8 : i32
    %6 = vector.broadcast %c8_i32_3 : i32 to vector<8x1xi32>
    %7 = arith.cmpi slt, %5, %6 : vector<8x1xi32>
    %8 = tpu.iota {dimensions = array<i32: 1>} : vector<1x128xi32>
    %9 = vector.broadcast %8 : vector<1x128xi32> to vector<8x128xi32>
    %10 = vector.broadcast %1 : vector<8x1xi32> to vector<8x128xi32>
    %11 = arith.cmpi eq, %9, %10 : vector<8x128xi32>
    %cst = arith.constant dense<0xFF800000> : vector<8xf32>
    %12 = vector.multi_reduction <maximumf>, %0, %cst [1] : vector<8x128xf32> to vector<8xf32>
    %13 = vector.shape_cast %12 : vector<8xf32> to vector<8x1xf32>
    %c0_i32 = arith.constant 0 : i32
    %14 = arith.sitofp %c0_i32 : i32 to f32
    %15 = vector.broadcast %14 : f32 to vector<8x128xf32>
    %16 = arith.select %11, %0, %15 : vector<8x128xi1>, vector<8x128xf32>
    %cst_4 = arith.constant dense<0.000000e+00> : vector<8xf32>
    %17 = vector.multi_reduction <add>, %16, %cst_4 [1] : vector<8x128xf32> to vector<8xf32>
    %18 = vector.shape_cast %17 : vector<8xf32> to vector<8x1xf32>
    %19 = vector.broadcast %18 : vector<8x1xf32> to vector<8x128xf32>
    %20 = arith.cmpf ogt, %0, %19 : vector<8x128xf32>
    %21 = arith.extui %20 : vector<8x128xi1> to vector<8x128xi32>
    %cst_5 = arith.constant dense<0> : vector<8xi32>
    %22 = vector.multi_reduction <add>, %21, %cst_5 [1] : vector<8x128xi32> to vector<8xi32>
    %23 = vector.shape_cast %22 : vector<8xi32> to vector<8x1xi32>
    %24 = vector.broadcast %13 : vector<8x1xf32> to vector<8x128xf32>
    %25 = arith.subf %0, %24 : vector<8x128xf32>
    %26 = math.exp %25 : vector<8x128xf32>
    %cst_6 = arith.constant dense<0.000000e+00> : vector<8xf32>
    %27 = vector.multi_reduction <add>, %26, %cst_6 [1] : vector<8x128xf32> to vector<8xf32>
    %28 = vector.shape_cast %27 : vector<8xf32> to vector<8x1xf32>
    %29 = arith.subf %13, %18 : vector<8x1xf32>
    %30 = math.log %28 : vector<8x1xf32>
    %31 = arith.addf %29, %30 : vector<8x1xf32>
    %cst_7 = arith.constant 0.000000e+00 : f32
    %32 = vector.broadcast %cst_7 : f32 to vector<8x1xf32>
    %33 = arith.select %7, %31, %32 : vector<8x1xi1>, vector<8x1xf32>
    %34 = vector.shape_cast %33 : vector<8x1xf32> to vector<1x8x1xf32>
    %cst_8 = arith.constant dense<0.000000e+00> : vector<1xf32>
    %35 = vector.multi_reduction <add>, %34, %cst_8 [1, 2] : vector<1x8x1xf32> to vector<1xf32>
    %36 = vector.shape_cast %35 : vector<1xf32> to vector<1x1x1xf32>
    %37 = vector.extract %36[0, 0, 0] : f32 from vector<1x1x1xf32>
    %c1_i32 = arith.constant 1 : i32
    %38 = vector.broadcast %c1_i32 : i32 to vector<8x1xi32>
    %39 = arith.cmpi slt, %23, %38 : vector<8x1xi32>
    %40 = arith.andi %7, %39 : vector<8x1xi1>
    %cst_9 = arith.constant 1.000000e+00 : f32
    %cst_10 = arith.constant 0.000000e+00 : f32
    %41 = vector.broadcast %cst_9 : f32 to vector<8x1xf32>
    %42 = vector.broadcast %cst_10 : f32 to vector<8x1xf32>
    %43 = arith.select %40, %41, %42 : vector<8x1xi1>, vector<8x1xf32>
    %44 = vector.shape_cast %43 : vector<8x1xf32> to vector<1x8x1xf32>
    %cst_11 = arith.constant dense<0.000000e+00> : vector<1xf32>
    %45 = vector.multi_reduction <add>, %44, %cst_11 [1, 2] : vector<1x8x1xf32> to vector<1xf32>
    %46 = vector.shape_cast %45 : vector<1xf32> to vector<1x1x1xf32>
    %47 = vector.extract %46[0, 0, 0] : f32 from vector<1x1x1xf32>
    %c5_i32 = arith.constant 5 : i32
    %48 = vector.broadcast %c5_i32 : i32 to vector<8x1xi32>
    %49 = arith.cmpi slt, %23, %48 : vector<8x1xi32>
    %50 = arith.andi %7, %49 : vector<8x1xi1>
    %cst_12 = arith.constant 1.000000e+00 : f32
    %cst_13 = arith.constant 0.000000e+00 : f32
    %51 = vector.broadcast %cst_12 : f32 to vector<8x1xf32>
    %52 = vector.broadcast %cst_13 : f32 to vector<8x1xf32>
    %53 = arith.select %50, %51, %52 : vector<8x1xi1>, vector<8x1xf32>
    %54 = vector.shape_cast %53 : vector<8x1xf32> to vector<1x8x1xf32>
    %cst_14 = arith.constant dense<0.000000e+00> : vector<1xf32>
    %55 = vector.multi_reduction <add>, %54, %cst_14 [1, 2] : vector<1x8x1xf32> to vector<1xf32>
    %56 = vector.shape_cast %55 : vector<1xf32> to vector<1x1x1xf32>
    %57 = vector.extract %56[0, 0, 0] : f32 from vector<1x1x1xf32>
    %58 = tpu.iota {dimensions = array<i32: 2>} : vector<1x8x128xi32>
    %59 = tpu.iota {dimensions = array<i32: 1>} : vector<1x8x128xi32>
    %c0_i32_15 = arith.constant 0 : i32
    %60 = vector.broadcast %c0_i32_15 : i32 to vector<1x8x128xi32>
    %61 = arith.cmpi eq, %59, %60 : vector<1x8x128xi32>
    %c0_i32_16 = arith.constant 0 : i32
    %62 = vector.broadcast %c0_i32_16 : i32 to vector<1x8x128xi32>
    %63 = arith.cmpi eq, %58, %62 : vector<1x8x128xi32>
    %64 = arith.andi %61, %63 : vector<1x8x128xi1>
    %cst_17 = arith.constant 0.000000e+00 : f32
    %65 = vector.broadcast %37 : f32 to vector<1x8x128xf32>
    %66 = vector.broadcast %cst_17 : f32 to vector<1x8x128xf32>
    %67 = arith.select %64, %65, %66 : vector<1x8x128xi1>, vector<1x8x128xf32>
    %c1_i32_18 = arith.constant 1 : i32
    %68 = vector.broadcast %c1_i32_18 : i32 to vector<1x8x128xi32>
    %69 = arith.cmpi eq, %58, %68 : vector<1x8x128xi32>
    %70 = arith.andi %61, %69 : vector<1x8x128xi1>
    %71 = vector.broadcast %47 : f32 to vector<1x8x128xf32>
    %72 = arith.select %70, %71, %67 : vector<1x8x128xi1>, vector<1x8x128xf32>
    %c2_i32 = arith.constant 2 : i32
    %73 = vector.broadcast %c2_i32 : i32 to vector<1x8x128xi32>
    %74 = arith.cmpi eq, %58, %73 : vector<1x8x128xi32>
    %75 = arith.andi %61, %74 : vector<1x8x128xi1>
    %76 = vector.broadcast %57 : f32 to vector<1x8x128xf32>
    %77 = arith.select %75, %76, %72 : vector<1x8x128xi1>, vector<1x8x128xf32>
    %c0_19 = arith.constant 0 : index
    %c0_20 = arith.constant 0 : index
    %c0_21 = arith.constant 0 : index
    %78 = vector.load %arg3[%c0_19, %c0_20, %c0_21] : memref<1x8x128xf32, #tpu.memory_space<vmem>>, vector<1x8x128xf32>
    tpu.vector_store %arg3[%c0_19, %c0_20, %c0_21], %77 {strides = array<i32>} : memref<1x8x128xf32, #tpu.memory_space<vmem>>, vector<1x8x128xf32>,
    return
  }
  func.func @transform_0(%arg0: i32) -> (i32, i32) {
    %c0_i32 = arith.constant 0 : i32
    %c0_i32_0 = arith.constant 0 : i32
    return %arg0, %c0_i32 : i32, i32
  }
  func.func @transform_1(%arg0: i32) -> (i32, i32) {
    %c0_i32 = arith.constant 0 : i32
    %c0_i32_0 = arith.constant 0 : i32
    return %arg0, %c0_i32 : i32, i32
  }
  func.func @transform_2(%arg0: i32) -> (i32, i32, i32) {
    %c0_i32 = arith.constant 0 : i32
    %c0_i32_0 = arith.constant 0 : i32
    %c0_i32_1 = arith.constant 0 : i32
    return %arg0, %c0_i32, %c0_i32_0 : i32, i32, i32
  }
}

</mosaic_0001>

<llo_original>
// kernel: tpu_custom_call.1
$region0: #{tpu_custom_call.1}
  #allocation0 [shape = 'u32[]', space=smem, size = 0x4, offset = 0x4, fixed_abs, tag = 'smem constant byte address 0x4 - core index']
  #allocation1 [shape = 'u32[72,128]{1,0:T(1,128)}', space=vmem, size = 0x9000, scoped, tag = 'internal scratch']
  %s0 = inlined_call_operand.vmem [shape: f32[8,128], index: 0, kind: input, shape index: {}]
  %s1 = inlined_call_operand.vmem [shape: s32[8,1], index: 1, kind: input, shape index: {}]
  %s2 = inlined_call_operand.hbm [shape: f32[1,8,128], index: 2, kind: output, shape index: {}]
  %s3 = sld [smem:[#allocation0]]
  $region18: #{tpu_custom_call.1} parent=0
    _
  %s5 = ssub.s32 1, %s3
  %s6 = scalar_select 0, %s5, %s3
  $region1: #{tpu_custom_call.1} parent=0
    #allocation2 [shape = 'u8[4096]{0}', space=vmem, size = 0x1000, scoped, tag = 'output window, operand 0, single buffered']
    #allocation3 [shape = 's32[1]{0}', space=sflag, size = 0x4, scoped, tag = 'scoped memory for tpu_custom_call.1']
    %7 = vsyncpa [#allocation3], 0
    // Predicated region
    $region2: #{tpu_custom_call.1} parent=1 // pred_check
      _
    $region3: #{tpu_custom_call.1} parent=1 // pred_check_branch
      %9 = sbr.rel (0) target = $region5
    $region4: #{tpu_custom_call.1} parent=1 // pred_region
      _
    $region5: #{tpu_custom_call.1} parent=1 // pred_fallthru
      _
    // Predicated region
    $region6: #{tpu_custom_call.1} parent=1 // pred_check
      _
    $region7: #{tpu_custom_call.1} parent=1 // pred_check_branch
      %11 = sbr.rel (0) target = $region9
    $region8: #{tpu_custom_call.1} parent=1 // pred_region
      _
    $region9: #{tpu_custom_call.1} parent=1 // pred_fallthru
      _
    %v12 = vld [vmem:[%s0] sm:$0xff]
    %v13 = vld [vmem:[%s1] sm:$0xff]
    %v14 = vlaneseq
    %v15 = vshrl.u32 %v14, 7
    %s16 = smul.u32 0, 8
    %v17 = vstv %s16
    %v18 = vadd.s32 %v17, %v15
    %vm19 = vcmp.lt.s32.totalorder %v18, 8
    %v20 = vlaneseq
    %v21 = vand.u32 %v20, 127
    %22 = vset.pattern.permute.xlu0 0
    %23 = vperm.xlu0 %22, %v13
    %v24 = vpop.permute.xlu0 %23
    %vm25 = vcmp.eq.s32.totalorder %v21, %v24
    %26 = vmax.xlane.f32.xlu0 %v12
    %v27 = vpop.xlane.xlu0 %26
    %v28 = vsel %vm25, %v12, 0.0
    %29 = vadd.xlane.f32.xlu0 %v28
    %v30 = vpop.xlane.xlu0 %29
    %vm31 = vcmp.gt.f32.partialorder %v12, %v30
    %v32 = vsel %vm31, 1, 0
    %v33 = vand.u32 %v32, 65535
    %v34 = vshrl.u32 %v32, 16
    %v35 = vcvt.s32.f32 %v33
    %v36 = vcvt.s32.f32 %v34
    %37 = vadd.xlane.f32.xlu0 %v35
    %v38 = vpop.xlane.xlu0 %37
    %39 = vadd.xlane.f32.xlu0 %v36
    %v40 = vpop.xlane.xlu0 %39
    %v41 = vcvt.f32.s32 %v38
    %v42 = vcvt.f32.s32 %v40
    %v43 = vshll.u32 %v42, 16
    %v44 = vadd.s32 %v43, %v41
    %v45 = vsub.f32 %v12, %v27
    %v46 = vmul.f32 %v45, 1.442695
    %v47 = vpow.pop %v46
    %48 = vadd.xlane.f32.xlu0 %v47
    %v49 = vpop.xlane.xlu0 %48
    %v50 = vsub.f32 %v27, %v30
    %v51 = vlog2.pop %v49
    %v52 = vmul.f32 %v51, 0.6931472
    %v53 = vadd.f32 %v50, %v52
    %v54 = vsel %vm19, %v53, 0.0
    %vm55 = vcmask 7168
    %v56 = vsel %vm55, %v54, 0.0
    %57 = vadd.xlane.f32.xlu0 %v56
    %v58 = vpop.xlane.xlu0 %57
    %v59 = vrot.slane %v58, 4
    %v60 = vadd.f32 %v58, %v59
    %v61 = vrot.slane %v60, 2
    %v62 = vadd.f32 %v60, %v61
    %v63 = vrot.slane %v62, 1
    %v64 = vadd.f32 %v62, %v63
    %s65 = vtos %v64
    %vm66 = vcmp.lt.s32.totalorder %v44, 1
    %vm67 = vmand %vm19, %vm66
    %v68 = vsel %vm67, 1.0, 0.0
    %v69 = vsel %vm55, %v68, 0.0
    %70 = vadd.xlane.f32.xlu0 %v69
    %v71 = vpop.xlane.xlu0 %70
    %v72 = vrot.slane %v71, 4
    %v73 = vadd.f32 %v71, %v72
    %v74 = vrot.slane %v73, 2
    %v75 = vadd.f32 %v73, %v74
    %v76 = vrot.slane %v75, 1
    %v77 = vadd.f32 %v75, %v76
    %s78 = vtos %v77
    %vm79 = vcmp.lt.s32.totalorder %v44, 5
    %vm80 = vmand %vm19, %vm79
    %v81 = vsel %vm80, 1.0, 0.0
    %v82 = vsel %vm55, %v81, 0.0
    %83 = vadd.xlane.f32.xlu0 %v82
    %v84 = vpop.xlane.xlu0 %83
    %v85 = vrot.slane %v84, 4
    %v86 = vadd.f32 %v84, %v85
    %v87 = vrot.slane %v86, 2
    %v88 = vadd.f32 %v86, %v87
    %v89 = vrot.slane %v88, 1
    %v90 = vadd.f32 %v88, %v89
    %s91 = vtos %v90
    %vm92 = vcmp.eq.s32.totalorder %v15, 0
    %vm93 = vcmp.eq.s32.totalorder %v21, 0
    %vm94 = vmand %vm92, %vm93
    %v95 = vstv %s65
    %v96 = vsel %vm94, %v95, 0.0
    %vm97 = vcmp.eq.s32.totalorder %v21, 1
    %vm98 = vmand %vm92, %vm97
    %v99 = vstv %s78
    %v100 = vsel %vm98, %v99, %v96
    %vm101 = vcmp.eq.s32.totalorder %v21, 2
    %vm102 = vmand %vm92, %vm101
    %v103 = vstv %s91
    %v104 = vsel %vm102, %v103, %v100
    %105 = vst [vmem:[#allocation2] sm:$0xff] %v104
    // Predicated region
    $region10: #{tpu_custom_call.1} parent=1 // pred_check
      _
    $region11: #{tpu_custom_call.1} parent=1 // pred_check_branch
      %107 = sbr.rel (0) target = $region13
    $region12: #{tpu_custom_call.1} parent=1 // pred_region
      %109 = vsyncadd [#allocation3], 0
      %s111 = sshll.u32 [#allocation2], 4
      %s112 = int_to_ptr.vmem [resolvable:$true] %s111
      %s113 = sshll.u32 %s2, 4
      %s114 = int_to_ptr.hbm [resolvable:$true] %s113
      %116 = dma.vmem_to_hbm [thread:$0]  %s112, 128, %s114, [#allocation3]
    $region13: #{tpu_custom_call.1} parent=1 // pred_fallthru
      _
    // Predicated region
    $region14: #{tpu_custom_call.1} parent=1 // pred_check
      _
    $region15: #{tpu_custom_call.1} parent=1 // pred_check_branch
      %118 = sbr.rel (0) target = $region17
    $region16: #{tpu_custom_call.1} parent=1 // pred_region
      %120 = dma.done [#allocation3], 128
    $region17: #{tpu_custom_call.1} parent=1 // pred_fallthru
      _
    %121 = vsyncpa [#allocation3], 1

</llo_original>
